<compile_context>
chip_gen: v5e
topology: v5e:2x2
jax: 0.10.0
libtpu: 0.0.40
codegen_flags: <defaults>
</compile_context>

<pallas_src>
import functools

import jax
import jax.numpy as jnp
from jax.experimental import pallas as pl
from jax.experimental.pallas import tpu as pltpu

_LANE = 128
_SUBLANE = 8


def _round_up(n, m):
    return ((n + m - 1) // m) * m


# ----------------------------- Fused Pallas kernel --------------------------

def _fused_mlp_kernel(*refs):
    # refs = (x_ref, w1_ref, b1_ref, w2_ref, b2_ref, ..., wn_ref, bn_ref, o_ref)
    x_ref = refs[0]
    o_ref = refs[-1]
    wb_refs = refs[1:-1]
    n_layers = len(wb_refs) // 2

    a = x_ref[...]
    for i in range(n_layers):
        w = wb_refs[2 * i][...]       # (In_pad, Out_pad) -- already transposed
        b = wb_refs[2 * i + 1][...]   # (1, Out_pad)
        a = jnp.dot(a, w, preferred_element_type=jnp.float32) + b
        if i < n_layers - 1:
            a = jnp.maximum(a, 0.0)   # hidden layers: ReLU
    o_ref[...] = a.astype(o_ref.dtype)


# ------------------------------ Forward pass --------------------------------

@functools.partial(jax.jit, static_argnames=("training",))
def mlp_forward(x, params, training=True):
    """Replicates NeuralNetwork.forward: linear+ReLU(+dropout) for hidden layers,
    plain linear for the last layer, all fused into one Pallas kernel.

    x: (B, in_features) f32
    params: list of (W: (out_f, in_f), b: (out_f,)) in PyTorch convention.
    """
    # TODO(synk): dropout with p=0.0 is identity; non-zero p would need pltpu PRNG masking.
    del training

    B, in_features = x.shape
    out_features = params[-1][0].shape[0]

    # Pad batch to full sublanes and the input feature axis to full lanes.
    b_pad = _round_up(B, _SUBLANE)
    in_pad = _round_up(in_features, _LANE)
    xp = jnp.zeros((b_pad, in_pad), jnp.float32).at[:B, :in_features].set(x)

    # Pre-transpose weights to (In, Out) and zero-pad to lane-dense widths.
    # Zero padding is exact: padded hidden units get 0 weight + 0 bias -> ReLU(0)=0,
    # and contribute nothing downstream; padded output lanes are sliced off.
    inputs = [xp]
    prev_pad = in_pad
    for (w, b) in params:
        out_f, in_f = w.shape
        out_pad = _round_up(out_f, _LANE)
        wt = jnp.zeros((prev_pad, out_pad), jnp.float32).at[:in_f, :out_f].set(w.T)
        bp = jnp.zeros((1, out_pad), jnp.float32).at[0, :out_f].set(b)
        inputs.extend([wt, bp])
        prev_pad = out_pad

    out_pad_final = prev_pad
    vmem_spec = lambda: pl.BlockSpec(memory_space=pltpu.MemorySpace.VMEM)

    yp = pl.pallas_call(
        _fused_mlp_kernel,
        out_shape=jax.ShapeDtypeStruct((b_pad, out_pad_final), jnp.float32),
        in_specs=[vmem_spec() for _ in inputs],
        out_specs=vmem_spec(),
    )(*inputs)

    return yp[:B, :out_features]


# ------------------------- Parameter initialization -------------------------

def orthogonal_init(key, out_features, in_features, gain):
    """Deterministic orthogonal init matching torch.nn.init.orthogonal_ semantics."""
    rows, cols = out_features, in_features
    flat = jax.random.normal(key, (max(rows, cols), min(rows, cols)), dtype=jnp.float32)
    q, r = jnp.linalg.qr(flat)
    d = jnp.sign(jnp.diagonal(r))
    d = jnp.where(d == 0, 1.0, d)  # guard against zero diagonal entries
    q = q * d[None, :]
    if rows < cols:
        q = q.T
    return gain * q[:rows, :cols]


def make_params(architecture, key, activation='relu'):
    gain = jnp.sqrt(2.0) if activation == 'relu' else (5.0 / 3.0)
    params = []
    for i in range(len(architecture) - 1):
        key, sub = jax.random.split(key)
        w = orthogonal_init(sub, architecture[i + 1], architecture[i], gain)
        b = jnp.zeros((architecture[i + 1],), dtype=jnp.float32)
        params.append((w, b))
    return params


# ---------------------------------- Main -------------------------------------

if __name__ == "__main__":
    # Small MLP: architecture = [16, 32, 32, 4], batch = 2
    architecture = [16, 32, 32, 4]
    batch = 2

    key = jax.random.PRNGKey(0)
    key_x, key_p = jax.random.split(key)

    x = jax.random.normal(key_x, (batch, architecture[0]), dtype=jnp.float32)
    params = make_params(architecture, key_p, activation='relu')

    out = mlp_forward(x, params, training=True)
    out = jax.block_until_ready(out)

    # Pure-JAX reference check
    a_ref = x
    for i, (w, b) in enumerate(params):
        a_ref = a_ref @ w.T + b
        if i < len(params) - 1:
            a_ref = jnp.maximum(a_ref, 0.0)
    assert out.shape == (batch, architecture[-1])
    assert jnp.allclose(out, a_ref, atol=1e-5, rtol=1e-5)

    print("KERNEL_OK")
</pallas_src>

<mosaic_0001>
module attributes {stable_mosaic.version = 11 : i64} {
  func.func @_fused_mlp_kernel(%arg0: memref<8x128xf32, #tpu.memory_space<vmem>>, %arg1: memref<128x128xf32, #tpu.memory_space<vmem>>, %arg2: memref<1x128xf32, #tpu.memory_space<vmem>>, %arg3: memref<128x128xf32, #tpu.memory_space<vmem>>, %arg4: memref<1x128xf32, #tpu.memory_space<vmem>>, %arg5: memref<128x128xf32, #tpu.memory_space<vmem>>, %arg6: memref<1x128xf32, #tpu.memory_space<vmem>>, %arg7: memref<8x128xf32, #tpu.memory_space<vmem>>) attributes {dimension_semantics = [], scalar_prefetch = 0 : i64, scratch_operands = 0 : i64, tpu.core_type = #tpu.core_type<tc>} {
    %c0 = arith.constant 0 : index
    %c0_0 = arith.constant 0 : index
    %0 = vector.load %arg0[%c0, %c0_0] : memref<8x128xf32, #tpu.memory_space<vmem>>, vector<8x128xf32>
    %c0_1 = arith.constant 0 : index
    %c0_2 = arith.constant 0 : index
    %1 = vector.load %arg1[%c0_1, %c0_2] : memref<128x128xf32, #tpu.memory_space<vmem>>, vector<128x128xf32>
    %c0_3 = arith.constant 0 : index
    %c0_4 = arith.constant 0 : index
    %2 = vector.load %arg2[%c0_3, %c0_4] : memref<1x128xf32, #tpu.memory_space<vmem>>, vector<1x128xf32>
    %cst = arith.constant dense<0.000000e+00> : vector<8x128xf32>
    %3 = tpu.matmul %0, %1, %cst {dimension_numbers = #tpu.dot_dimension_numbers<[1], [0], [0], [1], [0, 0, 1, 1], [], []>} : vector<8x128xf32>, vector<128x128xf32>, vector<8x128xf32> -> vector<8x128xf32>
    %4 = vector.broadcast %2 : vector<1x128xf32> to vector<8x128xf32>
    %5 = arith.addf %3, %4 : vector<8x128xf32>
    %cst_5 = arith.constant 0.000000e+00 : f32
    %6 = vector.broadcast %cst_5 : f32 to vector<8x128xf32>
    %7 = arith.maximumf %5, %6 : vector<8x128xf32>
    %c0_6 = arith.constant 0 : index
    %c0_7 = arith.constant 0 : index
    %8 = vector.load %arg3[%c0_6, %c0_7] : memref<128x128xf32, #tpu.memory_space<vmem>>, vector<128x128xf32>
    %c0_8 = arith.constant 0 : index
    %c0_9 = arith.constant 0 : index
    %9 = vector.load %arg4[%c0_8, %c0_9] : memref<1x128xf32, #tpu.memory_space<vmem>>, vector<1x128xf32>
    %cst_10 = arith.constant dense<0.000000e+00> : vector<8x128xf32>
    %10 = tpu.matmul %7, %8, %cst_10 {dimension_numbers = #tpu.dot_dimension_numbers<[1], [0], [0], [1], [0, 0, 1, 1], [], []>} : vector<8x128xf32>, vector<128x128xf32>, vector<8x128xf32> -> vector<8x128xf32>
    %11 = vector.broadcast %9 : vector<1x128xf32> to vector<8x128xf32>
    %12 = arith.addf %10, %11 : vector<8x128xf32>
    %cst_11 = arith.constant 0.000000e+00 : f32
    %13 = vector.broadcast %cst_11 : f32 to vector<8x128xf32>
    %14 = arith.maximumf %12, %13 : vector<8x128xf32>
    %c0_12 = arith.constant 0 : index
    %c0_13 = arith.constant 0 : index
    %15 = vector.load %arg5[%c0_12, %c0_13] : memref<128x128xf32, #tpu.memory_space<vmem>>, vector<128x128xf32>
    %c0_14 = arith.constant 0 : index
    %c0_15 = arith.constant 0 : index
    %16 = vector.load %arg6[%c0_14, %c0_15] : memref<1x128xf32, #tpu.memory_space<vmem>>, vector<1x128xf32>
    %cst_16 = arith.constant dense<0.000000e+00> : vector<8x128xf32>
    %17 = tpu.matmul %14, %15, %cst_16 {dimension_numbers = #tpu.dot_dimension_numbers<[1], [0], [0], [1], [0, 0, 1, 1], [], []>} : vector<8x128xf32>, vector<128x128xf32>, vector<8x128xf32> -> vector<8x128xf32>
    %18 = vector.broadcast %16 : vector<1x128xf32> to vector<8x128xf32>
    %19 = arith.addf %17, %18 : vector<8x128xf32>
    %c0_17 = arith.constant 0 : index
    %c0_18 = arith.constant 0 : index
    %20 = vector.load %arg7[%c0_17, %c0_18] : memref<8x128xf32, #tpu.memory_space<vmem>>, vector<8x128xf32>
    tpu.vector_store %arg7[%c0_17, %c0_18], %19 {strides = array<i32>} : memref<8x128xf32, #tpu.memory_space<vmem>>, vector<8x128xf32>,
    return
  }
}

</mosaic_0001>

<llo_original>
// kernel: mlp_forward.1
$region0: #{mlp_forward.1}
  #allocation0 [shape = 'u32[]', space=smem, size = 0x4, offset = 0x4, fixed_abs, tag = 'smem constant byte address 0x4 - core index']
  #allocation1 [shape = 'u32[72,128]{1,0:T(1,128)}', space=vmem, size = 0x9000, scoped, tag = 'internal scratch']
  %s0 = inlined_call_operand.vmem [shape: f32[8,128], index: 0, kind: input, shape index: {}]
  %s1 = inlined_call_operand.vmem [shape: f32[128,128], index: 1, kind: input, shape index: {}]
  %s2 = inlined_call_operand.vmem [shape: f32[1,128], index: 2, kind: input, shape index: {}]
  %s3 = inlined_call_operand.vmem [shape: f32[128,128], index: 3, kind: input, shape index: {}]
  %s4 = inlined_call_operand.vmem [shape: f32[1,128], index: 4, kind: input, shape index: {}]
  %s5 = inlined_call_operand.vmem [shape: f32[128,128], index: 5, kind: input, shape index: {}]
  %s6 = inlined_call_operand.vmem [shape: f32[1,128], index: 6, kind: input, shape index: {}]
  %s7 = inlined_call_operand.vmem [shape: f32[8,128], index: 7, kind: output, shape index: {}]
  %s8 = sld [smem:[#allocation0]]
  $region38: #{mlp_forward.1} parent=0
    _
  %s10 = ssub.s32 1, %s8
  %s11 = scalar_select 0, %s10, %s8
  // Predicated region
  $region2: #{mlp_forward.1} parent=0 // pred_check
    _
  $region3: #{mlp_forward.1} parent=0 // pred_check_branch
    %13 = sbr.rel (0) target = $region5
  $region4: #{mlp_forward.1} parent=0 // pred_region
    _
  $region5: #{mlp_forward.1} parent=0 // pred_fallthru
    _
  // Predicated region
  $region6: #{mlp_forward.1} parent=0 // pred_check
    _
  $region7: #{mlp_forward.1} parent=0 // pred_check_branch
    %15 = sbr.rel (0) target = $region9
  $region8: #{mlp_forward.1} parent=0 // pred_region
    _
  $region9: #{mlp_forward.1} parent=0 // pred_fallthru
    _
  // Predicated region
  $region10: #{mlp_forward.1} parent=0 // pred_check
    _
  $region11: #{mlp_forward.1} parent=0 // pred_check_branch
    %17 = sbr.rel (0) target = $region13
  $region12: #{mlp_forward.1} parent=0 // pred_region
    _
  $region13: #{mlp_forward.1} parent=0 // pred_fallthru
    _
  // Predicated region
  $region14: #{mlp_forward.1} parent=0 // pred_check
    _
  $region15: #{mlp_forward.1} parent=0 // pred_check_branch
    %19 = sbr.rel (0) target = $region17
  $region16: #{mlp_forward.1} parent=0 // pred_region
    _
  $region17: #{mlp_forward.1} parent=0 // pred_fallthru
    _
  // Predicated region
  $region18: #{mlp_forward.1} parent=0 // pred_check
    _
  $region19: #{mlp_forward.1} parent=0 // pred_check_branch
    %21 = sbr.rel (0) target = $region21
  $region20: #{mlp_forward.1} parent=0 // pred_region
    _
  $region21: #{mlp_forward.1} parent=0 // pred_fallthru
    _
  // Predicated region
  $region22: #{mlp_forward.1} parent=0 // pred_check
    _
  $region23: #{mlp_forward.1} parent=0 // pred_check_branch
    %23 = sbr.rel (0) target = $region25
  $region24: #{mlp_forward.1} parent=0 // pred_region
    _
  $region25: #{mlp_forward.1} parent=0 // pred_fallthru
    _
  // Predicated region
  $region26: #{mlp_forward.1} parent=0 // pred_check
    _
  $region27: #{mlp_forward.1} parent=0 // pred_check_branch
    %25 = sbr.rel (0) target = $region29
  $region28: #{mlp_forward.1} parent=0 // pred_region
    _
  $region29: #{mlp_forward.1} parent=0 // pred_fallthru
    _
  %v26 = vld [vmem:[%s0] sm:$0xff]
  %v27 = vld [vmem:[%s1] sm:$0xff]
  %v28 = vld [vmem:[%s1 + $0x8] sm:$0xff]
  %v29 = vld [vmem:[%s1 + $0x10] sm:$0xff]
  %v30 = vld [vmem:[%s1 + $0x18] sm:$0xff]
  %v31 = vld [vmem:[%s1 + $0x20] sm:$0xff]
  %v32 = vld [vmem:[%s1 + $0x28] sm:$0xff]
  %v33 = vld [vmem:[%s1 + $0x30] sm:$0xff]
  %v34 = vld [vmem:[%s1 + $0x38] sm:$0xff]
  %v35 = vld [vmem:[%s1 + $0x40] sm:$0xff]
  %v36 = vld [vmem:[%s1 + $0x48] sm:$0xff]
  %v37 = vld [vmem:[%s1 + $0x50] sm:$0xff]
  %v38 = vld [vmem:[%s1 + $0x58] sm:$0xff]
  %v39 = vld [vmem:[%s1 + $0x60] sm:$0xff]
  %v40 = vld [vmem:[%s1 + $0x68] sm:$0xff]
  %v41 = vld [vmem:[%s1 + $0x70] sm:$0xff]
  %v42 = vld [vmem:[%s1 + $0x78] sm:$0xff]
  %v43 = vld [vmem:[%s2] sm:$0x1]
  %v45 = vperm.slane %v43, 0
  %47 = vmatpush.msra.mxu0 %v42
  %48 = vmatpush.msra.mxu0 %v41
  %49 = vmatpush.msra.mxu0 %v40
  %50 = vmatpush.msra.mxu0 %v39
  %51 = vmatpush.msra.mxu0 %v38
  %52 = vmatpush.msra.mxu0 %v37
  %53 = vmatpush.msra.mxu0 %v36
  %54 = vmatpush.msra.mxu0 %v35
  %55 = vmatpush.msra.mxu0 %v34
  %56 = vmatpush.msra.mxu0 %v33
  %57 = vmatpush.msra.mxu0 %v32
  %58 = vmatpush.msra.mxu0 %v31
  %59 = vmatpush.msra.mxu0 %v30
  %60 = vmatpush.msra.mxu0 %v29
  %61 = vmatpush.msra.mxu0 %v28
  %62 = vmatpush.msra.mxu0 %v27
  %63 = vmatmul.f32.gmra.mxu0 %v26
  %v64 = vpop.f32.mrf.mxu0
  %v65 = vadd.f32 %v45, %v64
  %66 = vdwg.mxu0
  %v67 = vmax.f32 %v65, 0.0
  %v68 = vld [vmem:[%s3] sm:$0xff]
  %v69 = vld [vmem:[%s3 + $0x8] sm:$0xff]
  %v70 = vld [vmem:[%s3 + $0x10] sm:$0xff]
  %v71 = vld [vmem:[%s3 + $0x18] sm:$0xff]
  %v72 = vld [vmem:[%s3 + $0x20] sm:$0xff]
  %v73 = vld [vmem:[%s3 + $0x28] sm:$0xff]
  %v74 = vld [vmem:[%s3 + $0x30] sm:$0xff]
  %v75 = vld [vmem:[%s3 + $0x38] sm:$0xff]
  %v76 = vld [vmem:[%s3 + $0x40] sm:$0xff]
  %v77 = vld [vmem:[%s3 + $0x48] sm:$0xff]
  %v78 = vld [vmem:[%s3 + $0x50] sm:$0xff]
  %v79 = vld [vmem:[%s3 + $0x58] sm:$0xff]
  %v80 = vld [vmem:[%s3 + $0x60] sm:$0xff]
  %v81 = vld [vmem:[%s3 + $0x68] sm:$0xff]
  %v82 = vld [vmem:[%s3 + $0x70] sm:$0xff]
  %v83 = vld [vmem:[%s3 + $0x78] sm:$0xff]
  %v84 = vld [vmem:[%s4] sm:$0x1]
  %v86 = vperm.slane %v84, 0
  %88 = vmatpush.msra.mxu0 %v83
  %89 = vmatpush.msra.mxu0 %v82
  %90 = vmatpush.msra.mxu0 %v81
  %91 = vmatpush.msra.mxu0 %v80
  %92 = vmatpush.msra.mxu0 %v79
  %93 = vmatpush.msra.mxu0 %v78
  %94 = vmatpush.msra.mxu0 %v77
  %95 = vmatpush.msra.mxu0 %v76
  %96 = vmatpush.msra.mxu0 %v75
  %97 = vmatpush.msra.mxu0 %v74
  %98 = vmatpush.msra.mxu0 %v73
  %99 = vmatpush.msra.mxu0 %v72
  %100 = vmatpush.msra.mxu0 %v71
  %101 = vmatpush.msra.mxu0 %v70
  %102 = vmatpush.msra.mxu0 %v69
  %103 = vmatpush.msra.mxu0 %v68
  %104 = vmatmul.f32.gmra.mxu0 %v67
  %v105 = vpop.f32.mrf.mxu0
  %v106 = vadd.f32 %v86, %v105
  %107 = vdwg.mxu0
  %v108 = vmax.f32 %v106, 0.0
  %v109 = vld [vmem:[%s5] sm:$0xff]
  %v110 = vld [vmem:[%s5 + $0x8] sm:$0xff]
  %v111 = vld [vmem:[%s5 + $0x10] sm:$0xff]
  %v112 = vld [vmem:[%s5 + $0x18] sm:$0xff]
  %v113 = vld [vmem:[%s5 + $0x20] sm:$0xff]
  %v114 = vld [vmem:[%s5 + $0x28] sm:$0xff]
  %v115 = vld [vmem:[%s5 + $0x30] sm:$0xff]
  %v116 = vld [vmem:[%s5 + $0x38] sm:$0xff]
  %v117 = vld [vmem:[%s5 + $0x40] sm:$0xff]
  %v118 = vld [vmem:[%s5 + $0x48] sm:$0xff]
  %v119 = vld [vmem:[%s5 + $0x50] sm:$0xff]
  %v120 = vld [vmem:[%s5 + $0x58] sm:$0xff]
  %v121 = vld [vmem:[%s5 + $0x60] sm:$0xff]
  %v122 = vld [vmem:[%s5 + $0x68] sm:$0xff]
  %v123 = vld [vmem:[%s5 + $0x70] sm:$0xff]
  %v124 = vld [vmem:[%s5 + $0x78] sm:$0xff]
  %v125 = vld [vmem:[%s6] sm:$0x1]
  %v127 = vperm.slane %v125, 0
  %129 = vmatpush.msra.mxu0 %v124
  %130 = vmatpush.msra.mxu0 %v123
  %131 = vmatpush.msra.mxu0 %v122
  %132 = vmatpush.msra.mxu0 %v121
  %133 = vmatpush.msra.mxu0 %v120
  %134 = vmatpush.msra.mxu0 %v119
  %135 = vmatpush.msra.mxu0 %v118
  %136 = vmatpush.msra.mxu0 %v117
  %137 = vmatpush.msra.mxu0 %v116
  %138 = vmatpush.msra.mxu0 %v115
  %139 = vmatpush.msra.mxu0 %v114
  %140 = vmatpush.msra.mxu0 %v113
  %141 = vmatpush.msra.mxu0 %v112
  %142 = vmatpush.msra.mxu0 %v111
  %143 = vmatpush.msra.mxu0 %v110
  %144 = vmatpush.msra.mxu0 %v109
  %145 = vmatmul.f32.gmra.mxu0 %v108
  %v146 = vpop.f32.mrf.mxu0
  %v147 = vadd.f32 %v127, %v146
  %148 = vdwg.mxu0
  %149 = vst [vmem:[%s7] sm:$0xff] %v147
  // Predicated region
  $region30: #{mlp_forward.1} parent=0 // pred_check
    _
  $region31: #{mlp_forward.1} parent=0 // pred_check_branch
    %151 = sbr.rel (0) target = $region33
  $region32: #{mlp_forward.1} parent=0 // pred_region
    _
  $region33: #{mlp_forward.1} parent=0 // pred_fallthru
    _
  // Predicated region
  $region34: #{mlp_forward.1} parent=0 // pred_check
    _
  $region35: #{mlp_forward.1} parent=0 // pred_check_branch
    %153 = sbr.rel (0) target = $region37
  $region36: #{mlp_forward.1} parent=0 // pred_region
    _
  $region37: #{mlp_forward.1} parent=0 // pred_fallthru
    _

</llo_original>
